<compile_context>
chip_gen: v6e
topology: v6e:2x2x1
jax: 0.10.0
libtpu: 0.0.40
codegen_flags: <defaults>
</compile_context>

<pallas_src>
import functools

import jax
import jax.numpy as jnp
import numpy as np
from jax import lax
from jax.experimental import pallas as pl
from jax.experimental.pallas import tpu as pltpu

_LANES = 128
_ACC_ROWS = 8               # accumulator sublane rows (one vreg per statistic)
_MAX_BLOCK_ROWS = 2048      # 2048x128 f32 = 1 MiB input blocks
_X_PAD = -1.0e4             # softplus/sigmoid of this underflow to exactly 0


def _stats_kernel(x_ref, t_ref, sums_ref, cnt_ref,
                  acc_pos, acc_neg, acc_pt, acc_den, mm_s, cnt_s,
                  *, n_valid_last):
    r = pl.program_id(0)
    nr = pl.num_programs(0)
    blk_rows, lanes = t_ref.shape
    blk_elems = blk_rows * lanes
    last_is_partial = n_valid_last < blk_elems       # static Python bool

    # ---- init (first grid step) -------------------------------------------
    @pl.when(r == 0)
    def _():
        acc_pos[...] = jnp.zeros_like(acc_pos)
        acc_neg[...] = jnp.zeros_like(acc_neg)
        acc_pt[...] = jnp.zeros_like(acc_pt)
        acc_den[...] = jnp.zeros_like(acc_den)
        mm_s[0] = jnp.float32(-jnp.inf)   # running max(targets)
        mm_s[1] = jnp.float32(jnp.inf)    # running min(targets)
        cnt_s[0] = jnp.int32(0)           # exact count(targets == running max)
        cnt_s[1] = jnp.int32(0)           # exact count(targets == running min)

    x = x_ref[...].astype(jnp.float32)    # upcast per block (bf16 streamed narrow)
    t = t_ref[...].astype(jnp.float32)

    def fold(v):
        # (blk_rows, 128) -> (8, 128): tree-fold before touching the VMEM
        # accumulators so their load/store traffic stays one vreg per stat.
        return jnp.sum(v.reshape(-1, _ACC_ROWS, lanes), axis=0)

    def merge_minmax(blk_max, cmax, blk_min, cmin):
        run_max = mm_s[0]
        run_min = mm_s[1]
        cnt_s[0] = jnp.where(blk_max > run_max, cmax,
                             jnp.where(blk_max == run_max, cnt_s[0] + cmax, cnt_s[0]))
        cnt_s[1] = jnp.where(blk_min < run_min, cmin,
                             jnp.where(blk_min == run_min, cnt_s[1] + cmin, cnt_s[1]))
        mm_s[0] = jnp.maximum(run_max, blk_max)
        mm_s[1] = jnp.minimum(run_min, blk_min)

    def accum(xb, tb, valid):
        # Shared-transcendental elementwise math (EUP), divide-free sigmoid.
        e = jnp.exp(-jnp.abs(xb))
        sp_neg = jnp.maximum(-xb, 0.0) + jnp.log1p(e)   # softplus(-x) = -log sigmoid(x)
        sp_pos = xb + sp_neg                            # softplus(x) (exact identity)
        sig = jnp.exp(-sp_neg)                          # sigmoid(x) = exp(-softplus(-x))

        acc_pos[...] += fold(tb * sp_neg)               # sum t * softplus(-x)
        acc_neg[...] += fold(sp_pos - tb * sp_pos)      # sum (1-t) * softplus(x)
        acc_pt[...] += fold(sig * tb)                   # sum sigmoid(x) * t
        acc_den[...] += fold(sig + tb)                  # sum sigmoid(x) + sum t

        if valid is None:
            blk_max = jnp.max(tb)
            blk_min = jnp.min(tb)
            cmax = jnp.sum((tb == blk_max).astype(jnp.int32))
            cmin = jnp.sum((tb == blk_min).astype(jnp.int32))
        else:
            blk_max = jnp.max(jnp.where(valid, tb, -jnp.inf))
            blk_min = jnp.min(jnp.where(valid, tb, jnp.inf))
            cmax = jnp.sum(((tb == blk_max) & valid).astype(jnp.int32))
            cmin = jnp.sum(((tb == blk_min) & valid).astype(jnp.int32))
        merge_minmax(blk_max, cmax, blk_min, cmin)

    if last_is_partial:
        @pl.when(r < nr - 1)
        def _():
            accum(x, t, None)            # unmasked fast path for all full blocks

        @pl.when(r == nr - 1)
        def _():
            # Mask ragged tail + Pallas out-of-bounds rows (last block only).
            n_full_rows = n_valid_last // lanes          # static
            rem = n_valid_last % lanes                   # static
            row = lax.broadcasted_iota(jnp.int32, (blk_rows, lanes), 0)
            if rem:
                lane = lax.broadcasted_iota(jnp.int32, (blk_rows, lanes), 1)
                valid = (row < n_full_rows) | ((row == n_full_rows) & (lane < rem))
            else:
                valid = row < n_full_rows
            xm = jnp.where(valid, x, _X_PAD)   # inert in every sum
            tm = jnp.where(valid, t, 0.0)
            accum(xm, tm, valid)
    else:
        accum(x, t, None)

    # ---- finalize: one cross-lane reduction per statistic ------------------
    @pl.when(r == nr - 1)
    def _():
        sums_ref[0] = jnp.sum(acc_pos[...])   # pos_term
        sums_ref[1] = jnp.sum(acc_neg[...])   # neg_term
        sums_ref[2] = jnp.sum(acc_pt[...])    # sum(sigmoid * t)
        sums_ref[3] = jnp.sum(acc_den[...])   # sum(sigmoid) + sum(t)
        cnt_ref[0] = cnt_s[0]                 # num_pos (exact int32)
        cnt_ref[1] = cnt_s[1]                 # num_neg (exact int32)


def _reduce_stats(xf, tf, blk_rows, grid_r, n_valid_last):
    kernel = functools.partial(_stats_kernel, n_valid_last=n_valid_last)
    return pl.pallas_call(
        kernel,
        out_shape=(jax.ShapeDtypeStruct((4,), jnp.float32),
                   jax.ShapeDtypeStruct((2,), jnp.int32)),
        grid_spec=pltpu.PrefetchScalarGridSpec(
            num_scalar_prefetch=0,
            grid=(grid_r,),
            in_specs=[
                pl.BlockSpec((blk_rows, _LANES), lambda r: (r, 0)),
                pl.BlockSpec((blk_rows, _LANES), lambda r: (r, 0)),
            ],
            out_specs=[
                pl.BlockSpec(memory_space=pltpu.MemorySpace.SMEM),
                pl.BlockSpec(memory_space=pltpu.MemorySpace.SMEM),
            ],
            scratch_shapes=[
                pltpu.VMEM((_ACC_ROWS, _LANES), jnp.float32),   # acc_pos
                pltpu.VMEM((_ACC_ROWS, _LANES), jnp.float32),   # acc_neg
                pltpu.VMEM((_ACC_ROWS, _LANES), jnp.float32),   # acc_pt
                pltpu.VMEM((_ACC_ROWS, _LANES), jnp.float32),   # acc_den
                pltpu.SMEM((2,), jnp.float32),                  # running max/min
                pltpu.SMEM((2,), jnp.int32),                    # running counts
            ],
        ),
        compiler_params=pltpu.CompilerParams(
            dimension_semantics=("arbitrary",)),   # carries the accumulators
    )(xf, tf)


def _round_up(v, m):
    return ((v + m - 1) // m) * m


def _maybe_f32(a):
    # Stream native f32 / bf16; everything else is upcast once in the wrapper.
    if a.dtype == jnp.float32 or a.dtype == jnp.bfloat16:
        return a
    return a.astype(jnp.float32)


@functools.partial(jax.jit, static_argnames=("block_rows",))
def combined_loss_average(inputs, targets,
                          max_weight_ratio=6.0, weight_dice=0.5, weight_bce=0.5,
                          weight_pos_last=0.1, weight_neg_last=0.1,
                          smooth_coeff=0.95, smooth=1e-08, block_rows=None):
    x = _maybe_f32(jnp.squeeze(inputs, axis=1))
    t = _maybe_f32(targets)
    n_elem = x.size                                   # static under jit

    total_rows = -(-n_elem // _LANES)
    if block_rows is None:
        blk_rows = min(_MAX_BLOCK_ROWS, _round_up(total_rows, 32))
    else:
        blk_rows = _round_up(int(block_rows), 32)
    grid_r = -(-total_rows // blk_rows)
    n_valid_last = n_elem - (grid_r - 1) * blk_rows * _LANES

    # Tiny pad (< 128 elems) only when n_elem is not a multiple of 128; the
    # values are masked in-kernel anyway, so they are semantically irrelevant.
    pad = total_rows * _LANES - n_elem
    x_flat = x.reshape(-1)
    t_flat = t.reshape(-1)
    if pad:
        x_flat = jnp.pad(x_flat, (0, pad), constant_values=_X_PAD)
        t_flat = jnp.pad(t_flat, (0, pad), constant_values=0.0)
    xf = x_flat.reshape(total_rows, _LANES)
    tf = t_flat.reshape(total_rows, _LANES)

    sums, counts = _reduce_stats(xf, tf, blk_rows, grid_r, n_valid_last)

    num_pos = counts[0].astype(jnp.float32)
    num_neg = counts[1].astype(jnp.float32)
    pos_term, neg_term, sum_pt, sum_den = sums[0], sums[1], sums[2], sums[3]

    total = num_pos + num_neg
    weight_pos = num_neg / total
    weight_neg = num_pos / total

    wps = smooth_coeff * weight_pos + (1.0 - smooth_coeff) * weight_pos_last
    wns = smooth_coeff * weight_neg + (1.0 - smooth_coeff) * weight_neg_last
    w0 = jnp.maximum(wps, 1e-08)
    w1 = jnp.maximum(wns, 1e-08)

    cond0 = (w0 / w1) > max_weight_ratio
    cond1 = (w1 / w0) > max_weight_ratio
    w0_new = jnp.where(cond0, max_weight_ratio * w1, w0)
    w1_new = jnp.where(jnp.logical_and(jnp.logical_not(cond0), cond1),
                       max_weight_ratio * w0, w1)
    pos_weight = w0_new / w1_new

    # BCE-with-logits (pos_weight) separates into the two reduced terms.
    bce_loss = (pos_weight * pos_term + neg_term) / jnp.float32(n_elem)

    intersection = jnp.maximum(sum_pt, smooth)
    denominator = jnp.maximum(sum_den, smooth)
    dice_loss = 1.0 - (2.0 * intersection + smooth) / denominator

    bce_loss = jnp.maximum(weight_bce * bce_loss, 1e-08)
    dice_loss = jnp.maximum(weight_dice * dice_loss, 1e-08)
    combined_loss = jnp.sqrt(dice_loss * bce_loss)
    return combined_loss, weight_pos, weight_neg


def _reference(inputs, targets, max_weight_ratio=6.0, weight_dice=0.5,
               weight_bce=0.5, weight_pos_last=0.1, weight_neg_last=0.1,
               smooth_coeff=0.95, smooth=1e-08):
    # pure-JAX reference mirroring the PyTorch forward
    x = jnp.squeeze(inputs, axis=1).astype(jnp.float32)
    t = targets.astype(jnp.float32)
    num_pos = jnp.sum(t == jnp.max(t)).astype(jnp.float32)
    num_neg = jnp.sum(t == jnp.min(t)).astype(jnp.float32)
    total = num_pos + num_neg
    weight_pos = num_neg / total
    weight_neg = num_pos / total
    wps = smooth_coeff * weight_pos + (1 - smooth_coeff) * weight_pos_last
    wns = smooth_coeff * weight_neg + (1 - smooth_coeff) * weight_neg_last
    w0, w1 = jnp.maximum(wps, 1e-8), jnp.maximum(wns, 1e-8)
    cond0 = w0 / w1 > max_weight_ratio
    cond1 = w1 / w0 > max_weight_ratio
    w0n = jnp.where(cond0, max_weight_ratio * w1, w0)
    w1n = jnp.where(~cond0 & cond1, max_weight_ratio * w0, w1)
    pw = w0n / w1n
    sp = lambda z: jnp.maximum(z, 0.0) + jnp.log1p(jnp.exp(-jnp.abs(z)))
    bce = jnp.mean(pw * t * sp(-x) + (1 - t) * sp(x))
    sig = jax.nn.sigmoid(x)
    inter = jnp.maximum(jnp.sum(sig * t), smooth)
    den = jnp.maximum(jnp.sum(sig) + jnp.sum(t), smooth)
    dice = 1 - (2.0 * inter + smooth) / den
    bce = jnp.maximum(weight_bce * bce, 1e-8)
    dice = jnp.maximum(weight_dice * dice, 1e-8)
    return jnp.sqrt(dice * bce), weight_pos, weight_neg


if __name__ == "__main__":
    key = jax.random.PRNGKey(0)
    k1, k2, k3, k4, k5, k6 = jax.random.split(key, 6)

    # Case 1: tiny single (partial, OOB-masked) block.
    inputs1 = jax.random.normal(k1, (2, 1, 16, 16), dtype=jnp.float32)
    targets1 = (jax.random.uniform(k2, (2, 16, 16)) > 0.5).astype(jnp.float32)
    got1 = combined_loss_average(inputs1, targets1)
    jax.block_until_ready(got1)
    want1 = _reference(inputs1, targets1)
    for g, w in zip(got1, want1):
        np.testing.assert_allclose(np.asarray(g), np.asarray(w),
                                   rtol=1e-4, atol=1e-6)

    # Case 2: multiple blocks + masked partial tail + native bf16 logits.
    inputs2 = jax.random.normal(k3, (2, 1, 48, 80),
                                dtype=jnp.float32).astype(jnp.bfloat16)
    targets2 = (jax.random.uniform(k4, (2, 48, 80)) > 0.7).astype(jnp.float32)
    got2 = combined_loss_average(inputs2, targets2, block_rows=32)
    jax.block_until_ready(got2)
    want2 = _reference(inputs2, targets2)
    for g, w in zip(got2, want2):
        np.testing.assert_allclose(np.asarray(g), np.asarray(w),
                                   rtol=1e-4, atol=1e-6)

    # Case 3: element count not a multiple of 128 (lane-remainder mask path).
    inputs3 = jax.random.normal(k5, (2, 1, 9, 7), dtype=jnp.float32)
    targets3 = (jax.random.uniform(k6, (2, 9, 7)) > 0.5).astype(jnp.float32)
    got3 = combined_loss_average(inputs3, targets3)
    jax.block_until_ready(got3)
    want3 = _reference(inputs3, targets3)
    for g, w in zip(got3, want3):
        np.testing.assert_allclose(np.asarray(g), np.asarray(w),
                                   rtol=1e-4, atol=1e-6)

    print("KERNEL_OK")
</pallas_src>

<mosaic_0001>
module attributes {stable_mosaic.version = 11 : i64} {
  func.func @_stats_kernel(%arg0: i32, %arg1: memref<32x128xf32, #tpu.memory_space<vmem>>, %arg2: memref<32x128xf32, #tpu.memory_space<vmem>>, %arg3: memref<4xf32, #tpu.memory_space<smem>>, %arg4: memref<2xi32, #tpu.memory_space<smem>>, %arg5: memref<8x128xf32, #tpu.memory_space<vmem>>, %arg6: memref<8x128xf32, #tpu.memory_space<vmem>>, %arg7: memref<8x128xf32, #tpu.memory_space<vmem>>, %arg8: memref<8x128xf32, #tpu.memory_space<vmem>>, %arg9: memref<2xf32, #tpu.memory_space<smem>>, %arg10: memref<2xi32, #tpu.memory_space<smem>>) attributes {dimension_semantics = [#tpu.dimension_semantics<arbitrary>], iteration_bounds = array<i64: 1>, scalar_prefetch = 0 : i64, scratch_operands = 6 : i64, tpu.core_type = #tpu.core_type<tc>, window_params = [{transform_indices = @transform_0, window_bounds = array<i64: 32, 128>}, {transform_indices = @transform_1, window_bounds = array<i64: 32, 128>}, {transform_indices = @transform_2, window_bounds = array<i64: 4>}, {transform_indices = @transform_3, window_bounds = array<i64: 2>}]} {
    %c0_i32 = arith.constant 0 : i32
    %0 = arith.cmpi eq, %arg0, %c0_i32 : i32
    %1 = arith.extui %0 : i1 to i32
    %c0_i32_0 = arith.constant 0 : i32
    %2 = arith.cmpi ne, %1, %c0_i32_0 : i32
    scf.if %2 {
      %cst = arith.constant 0.000000e+00 : f32
      %14 = vector.broadcast %cst : f32 to vector<8x128xf32>
      %c0_10 = arith.constant 0 : index
      %c0_11 = arith.constant 0 : index
      %15 = vector.load %arg5[%c0_10, %c0_11] : memref<8x128xf32, #tpu.memory_space<vmem>>, vector<8x128xf32>
      tpu.vector_store %arg5[%c0_10, %c0_11], %14 {strides = array<i32>} : memref<8x128xf32, #tpu.memory_space<vmem>>, vector<8x128xf32>,
      %cst_12 = arith.constant 0.000000e+00 : f32
      %16 = vector.broadcast %cst_12 : f32 to vector<8x128xf32>
      %c0_13 = arith.constant 0 : index
      %c0_14 = arith.constant 0 : index
      %17 = vector.load %arg6[%c0_13, %c0_14] : memref<8x128xf32, #tpu.memory_space<vmem>>, vector<8x128xf32>
      tpu.vector_store %arg6[%c0_13, %c0_14], %16 {strides = array<i32>} : memref<8x128xf32, #tpu.memory_space<vmem>>, vector<8x128xf32>,
      %cst_15 = arith.constant 0.000000e+00 : f32
      %18 = vector.broadcast %cst_15 : f32 to vector<8x128xf32>
      %c0_16 = arith.constant 0 : index
      %c0_17 = arith.constant 0 : index
      %19 = vector.load %arg7[%c0_16, %c0_17] : memref<8x128xf32, #tpu.memory_space<vmem>>, vector<8x128xf32>
      tpu.vector_store %arg7[%c0_16, %c0_17], %18 {strides = array<i32>} : memref<8x128xf32, #tpu.memory_space<vmem>>, vector<8x128xf32>,
      %cst_18 = arith.constant 0.000000e+00 : f32
      %20 = vector.broadcast %cst_18 : f32 to vector<8x128xf32>
      %c0_19 = arith.constant 0 : index
      %c0_20 = arith.constant 0 : index
      %21 = vector.load %arg8[%c0_19, %c0_20] : memref<8x128xf32, #tpu.memory_space<vmem>>, vector<8x128xf32>
      tpu.vector_store %arg8[%c0_19, %c0_20], %20 {strides = array<i32>} : memref<8x128xf32, #tpu.memory_space<vmem>>, vector<8x128xf32>,
      %cst_21 = arith.constant 0xFF800000 : f32
      %c0_22 = arith.constant 0 : index
      %22 = memref.load %arg9[%c0_22] : memref<2xf32, #tpu.memory_space<smem>>
      memref.store %cst_21, %arg9[%c0_22] : memref<2xf32, #tpu.memory_space<smem>>
      %cst_23 = arith.constant 0x7F800000 : f32
      %c1 = arith.constant 1 : index
      %23 = memref.load %arg9[%c1] : memref<2xf32, #tpu.memory_space<smem>>
      memref.store %cst_23, %arg9[%c1] : memref<2xf32, #tpu.memory_space<smem>>
      %c0_i32_24 = arith.constant 0 : i32
      %c0_25 = arith.constant 0 : index
      %24 = memref.load %arg10[%c0_25] : memref<2xi32, #tpu.memory_space<smem>>
      memref.store %c0_i32_24, %arg10[%c0_25] : memref<2xi32, #tpu.memory_space<smem>>
      %c0_i32_26 = arith.constant 0 : i32
      %c1_27 = arith.constant 1 : index
      %25 = memref.load %arg10[%c1_27] : memref<2xi32, #tpu.memory_space<smem>>
      memref.store %c0_i32_26, %arg10[%c1_27] : memref<2xi32, #tpu.memory_space<smem>>
    } else {
    }
    %c0 = arith.constant 0 : index
    %c0_1 = arith.constant 0 : index
    %3 = vector.load %arg1[%c0, %c0_1] : memref<32x128xf32, #tpu.memory_space<vmem>>, vector<32x128xf32>
    %c0_2 = arith.constant 0 : index
    %c0_3 = arith.constant 0 : index
    %4 = vector.load %arg2[%c0_2, %c0_3] : memref<32x128xf32, #tpu.memory_space<vmem>>, vector<32x128xf32>
    %c0_i32_4 = arith.constant 0 : i32
    %5 = arith.cmpi slt, %arg0, %c0_i32_4 : i32
    %6 = arith.extui %5 : i1 to i32
    %c0_i32_5 = arith.constant 0 : i32
    %7 = arith.cmpi ne, %6, %c0_i32_5 : i32
    scf.if %7 {
      %14 = math.absf %3 : vector<32x128xf32>
      %cst = arith.constant 0.000000e+00 : f32
      %15 = vector.broadcast %cst : f32 to vector<32x128xf32>
      %16 = arith.subf %15, %14 : vector<32x128xf32>
      %17 = math.exp %16 : vector<32x128xf32>
      %cst_10 = arith.constant 0.000000e+00 : f32
      %18 = vector.broadcast %cst_10 : f32 to vector<32x128xf32>
      %19 = arith.subf %18, %3 : vector<32x128xf32>
      %cst_11 = arith.constant 0.000000e+00 : f32
      %20 = vector.broadcast %cst_11 : f32 to vector<32x128xf32>
      %21 = arith.maximumf %19, %20 : vector<32x128xf32>
      %22 = math.log1p %17 : vector<32x128xf32>
      %23 = arith.addf %21, %22 : vector<32x128xf32>
      %24 = arith.addf %3, %23 : vector<32x128xf32>
      %cst_12 = arith.constant 0.000000e+00 : f32
      %25 = vector.broadcast %cst_12 : f32 to vector<32x128xf32>
      %26 = arith.subf %25, %23 : vector<32x128xf32>
      %27 = math.exp %26 : vector<32x128xf32>
      %c0_13 = arith.constant 0 : index
      %c0_14 = arith.constant 0 : index
      %28 = vector.load %arg5[%c0_13, %c0_14] : memref<8x128xf32, #tpu.memory_space<vmem>>, vector<8x128xf32>
      %29 = arith.mulf %4, %23 : vector<32x128xf32>
      %30 = vector.shape_cast %29 : vector<32x128xf32> to vector<4x8x128xf32>
      %cst_15 = arith.constant dense<0.000000e+00> : vector<8x128xf32>
      %31 = vector.multi_reduction <add>, %30, %cst_15 [0] : vector<4x8x128xf32> to vector<8x128xf32>
      %32 = arith.addf %28, %31 : vector<8x128xf32>
      %c0_16 = arith.constant 0 : index
      %c0_17 = arith.constant 0 : index
      %33 = vector.load %arg5[%c0_16, %c0_17] : memref<8x128xf32, #tpu.memory_space<vmem>>, vector<8x128xf32>
      tpu.vector_store %arg5[%c0_16, %c0_17], %32 {strides = array<i32>} : memref<8x128xf32, #tpu.memory_space<vmem>>, vector<8x128xf32>,
      %c0_18 = arith.constant 0 : index
      %c0_19 = arith.constant 0 : index
      %34 = vector.load %arg6[%c0_18, %c0_19] : memref<8x128xf32, #tpu.memory_space<vmem>>, vector<8x128xf32>
      %35 = arith.mulf %4, %24 : vector<32x128xf32>
      %36 = arith.subf %24, %35 : vector<32x128xf32>
      %37 = vector.shape_cast %36 : vector<32x128xf32> to vector<4x8x128xf32>
      %cst_20 = arith.constant dense<0.000000e+00> : vector<8x128xf32>
      %38 = vector.multi_reduction <add>, %37, %cst_20 [0] : vector<4x8x128xf32> to vector<8x128xf32>
      %39 = arith.addf %34, %38 : vector<8x128xf32>
      %c0_21 = arith.constant 0 : index
      %c0_22 = arith.constant 0 : index
      %40 = vector.load %arg6[%c0_21, %c0_22] : memref<8x128xf32, #tpu.memory_space<vmem>>, vector<8x128xf32>
      tpu.vector_store %arg6[%c0_21, %c0_22], %39 {strides = array<i32>} : memref<8x128xf32, #tpu.memory_space<vmem>>, vector<8x128xf32>,
      %c0_23 = arith.constant 0 : index
      %c0_24 = arith.constant 0 : index
      %41 = vector.load %arg7[%c0_23, %c0_24] : memref<8x128xf32, #tpu.memory_space<vmem>>, vector<8x128xf32>
      %42 = arith.mulf %27, %4 : vector<32x128xf32>
      %43 = vector.shape_cast %42 : vector<32x128xf32> to vector<4x8x128xf32>
      %cst_25 = arith.constant dense<0.000000e+00> : vector<8x128xf32>
      %44 = vector.multi_reduction <add>, %43, %cst_25 [0] : vector<4x8x128xf32> to vector<8x128xf32>
      %45 = arith.addf %41, %44 : vector<8x128xf32>
      %c0_26 = arith.constant 0 : index
      %c0_27 = arith.constant 0 : index
      %46 = vector.load %arg7[%c0_26, %c0_27] : memref<8x128xf32, #tpu.memory_space<vmem>>, vector<8x128xf32>
      tpu.vector_store %arg7[%c0_26, %c0_27], %45 {strides = array<i32>} : memref<8x128xf32, #tpu.memory_space<vmem>>, vector<8x128xf32>,
      %c0_28 = arith.constant 0 : index
      %c0_29 = arith.constant 0 : index
      %47 = vector.load %arg8[%c0_28, %c0_29] : memref<8x128xf32, #tpu.memory_space<vmem>>, vector<8x128xf32>
      %48 = arith.addf %27, %4 : vector<32x128xf32>
      %49 = vector.shape_cast %48 : vector<32x128xf32> to vector<4x8x128xf32>
      %cst_30 = arith.constant dense<0.000000e+00> : vector<8x128xf32>
      %50 = vector.multi_reduction <add>, %49, %cst_30 [0] : vector<4x8x128xf32> to vector<8x128xf32>
      %51 = arith.addf %47, %50 : vector<8x128xf32>
      %c0_31 = arith.constant 0 : index
      %c0_32 = arith.constant 0 : index
      %52 = vector.load %arg8[%c0_31, %c0_32] : memref<8x128xf32, #tpu.memory_space<vmem>>, vector<8x128xf32>
      tpu.vector_store %arg8[%c0_31, %c0_32], %51 {strides = array<i32>} : memref<8x128xf32, #tpu.memory_space<vmem>>, vector<8x128xf32>,
      %53 = vector.shape_cast %4 : vector<32x128xf32> to vector<1x32x128xf32>
      %cst_33 = arith.constant dense<0xFF800000> : vector<1xf32>
      %54 = vector.multi_reduction <maximumf>, %53, %cst_33 [1, 2] : vector<1x32x128xf32> to vector<1xf32>
      %55 = vector.shape_cast %54 : vector<1xf32> to vector<1x1x1xf32>
      %56 = vector.extract %55[0, 0, 0] : f32 from vector<1x1x1xf32>
      %57 = vector.shape_cast %4 : vector<32x128xf32> to vector<1x32x128xf32>
      %cst_34 = arith.constant dense<0x7F800000> : vector<1xf32>
      %58 = vector.multi_reduction <minimumf>, %57, %cst_34 [1, 2] : vector<1x32x128xf32> to vector<1xf32>
      %59 = vector.shape_cast %58 : vector<1xf32> to vector<1x1x1xf32>
      %60 = vector.extract %59[0, 0, 0] : f32 from vector<1x1x1xf32>
      %61 = vector.broadcast %56 : f32 to vector<32x128xf32>
      %62 = arith.cmpf oeq, %4, %61 : vector<32x128xf32>
      %63 = arith.extui %62 : vector<32x128xi1> to vector<32x128xi32>
      %64 = vector.shape_cast %63 : vector<32x128xi32> to vector<1x32x128xi32>
      %cst_35 = arith.constant dense<0> : vector<1xi32>
      %65 = vector.multi_reduction <add>, %64, %cst_35 [1, 2] : vector<1x32x128xi32> to vector<1xi32>
      %66 = vector.shape_cast %65 : vector<1xi32> to vector<1x1x1xi32>
      %67 = vector.extract %66[0, 0, 0] : i32 from vector<1x1x1xi32>
      %68 = vector.broadcast %60 : f32 to vector<32x128xf32>
      %69 = arith.cmpf oeq, %4, %68 : vector<32x128xf32>
      %70 = arith.extui %69 : vector<32x128xi1> to vector<32x128xi32>
      %71 = vector.shape_cast %70 : vector<32x128xi32> to vector<1x32x128xi32>
      %cst_36 = arith.constant dense<0> : vector<1xi32>
      %72 = vector.multi_reduction <add>, %71, %cst_36 [1, 2] : vector<1x32x128xi32> to vector<1xi32>
      %73 = vector.shape_cast %72 : vector<1xi32> to vector<1x1x1xi32>
      %74 = vector.extract %73[0, 0, 0] : i32 from vector<1x1x1xi32>
      %c0_37 = arith.constant 0 : index
      %75 = memref.load %arg9[%c0_37] : memref<2xf32, #tpu.memory_space<smem>>
      %c1 = arith.constant 1 : index
      %76 = memref.load %arg9[%c1] : memref<2xf32, #tpu.memory_space<smem>>
      %77 = arith.cmpf ogt, %56, %75 : f32
      %78 = arith.cmpf oeq, %56, %75 : f32
      %c0_38 = arith.constant 0 : index
      %79 = memref.load %arg10[%c0_38] : memref<2xi32, #tpu.memory_space<smem>>
      %80 = arith.addi %79, %67 : i32
      %c0_39 = arith.constant 0 : index
      %81 = memref.load %arg10[%c0_39] : memref<2xi32, #tpu.memory_space<smem>>
      %82 = arith.select %78, %80, %81 : i32
      %83 = arith.select %77, %67, %82 : i32
      %c0_40 = arith.constant 0 : index
      %84 = memref.load %arg10[%c0_40] : memref<2xi32, #tpu.memory_space<smem>>
      memref.store %83, %arg10[%c0_40] : memref<2xi32, #tpu.memory_space<smem>>
      %85 = arith.cmpf olt, %60, %76 : f32
      %86 = arith.cmpf oeq, %60, %76 : f32
      %c1_41 = arith.constant 1 : index
      %87 = memref.load %arg10[%c1_41] : memref<2xi32, #tpu.memory_space<smem>>
      %88 = arith.addi %87, %74 : i32
      %c1_42 = arith.constant 1 : index
      %89 = memref.load %arg10[%c1_42] : memref<2xi32, #tpu.memory_space<smem>>
      %90 = arith.select %86, %88, %89 : i32
      %91 = arith.select %85, %74, %90 : i32
      %c1_43 = arith.constant 1 : index
      %92 = memref.load %arg10[%c1_43] : memref<2xi32, #tpu.memory_space<smem>>
      memref.store %91, %arg10[%c1_43] : memref<2xi32, #tpu.memory_space<smem>>
      %93 = arith.maximumf %75, %56 : f32
      %c0_44 = arith.constant 0 : index
      %94 = memref.load %arg9[%c0_44] : memref<2xf32, #tpu.memory_space<smem>>
      memref.store %93, %arg9[%c0_44] : memref<2xf32, #tpu.memory_space<smem>>
      %95 = arith.minimumf %76, %60 : f32
      %c1_45 = arith.constant 1 : index
      %96 = memref.load %arg9[%c1_45] : memref<2xf32, #tpu.memory_space<smem>>
      memref.store %95, %arg9[%c1_45] : memref<2xf32, #tpu.memory_space<smem>>
    } else {
    }
    %c0_i32_6 = arith.constant 0 : i32
    %8 = arith.cmpi eq, %arg0, %c0_i32_6 : i32
    %9 = arith.extui %8 : i1 to i32
    %c0_i32_7 = arith.constant 0 : i32
    %10 = arith.cmpi ne, %9, %c0_i32_7 : i32
    scf.if %10 {
      %14 = tpu.iota {dimensions = array<i32: 0>} : vector<32x128xi32>
      %c4_i32 = arith.constant 4 : i32
      %15 = vector.broadcast %c4_i32 : i32 to vector<32x128xi32>
      %16 = arith.cmpi slt, %14, %15 : vector<32x128xi32>
      %cst = arith.constant -1.000000e+04 : f32
      %17 = vector.broadcast %cst : f32 to vector<32x128xf32>
      %18 = arith.select %16, %3, %17 : vector<32x128xi1>, vector<32x128xf32>
      %cst_10 = arith.constant 0.000000e+00 : f32
      %19 = vector.broadcast %cst_10 : f32 to vector<32x128xf32>
      %20 = arith.select %16, %4, %19 : vector<32x128xi1>, vector<32x128xf32>
      %21 = math.absf %18 : vector<32x128xf32>
      %cst_11 = arith.constant 0.000000e+00 : f32
      %22 = vector.broadcast %cst_11 : f32 to vector<32x128xf32>
      %23 = arith.subf %22, %21 : vector<32x128xf32>
      %24 = math.exp %23 : vector<32x128xf32>
      %cst_12 = arith.constant 0.000000e+00 : f32
      %25 = vector.broadcast %cst_12 : f32 to vector<32x128xf32>
      %26 = arith.subf %25, %18 : vector<32x128xf32>
      %cst_13 = arith.constant 0.000000e+00 : f32
      %27 = vector.broadcast %cst_13 : f32 to vector<32x128xf32>
      %28 = arith.maximumf %26, %27 : vector<32x128xf32>
      %29 = math.log1p %24 : vector<32x128xf32>
      %30 = arith.addf %28, %29 : vector<32x128xf32>
      %31 = arith.addf %18, %30 : vector<32x128xf32>
      %cst_14 = arith.constant 0.000000e+00 : f32
      %32 = vector.broadcast %cst_14 : f32 to vector<32x128xf32>
      %33 = arith.subf %32, %30 : vector<32x128xf32>
      %34 = math.exp %33 : vector<32x128xf32>
      %c0_15 = arith.constant 0 : index
      %c0_16 = arith.constant 0 : index
      %35 = vector.load %arg5[%c0_15, %c0_16] : memref<8x128xf32, #tpu.memory_space<vmem>>, vector<8x128xf32>
      %36 = arith.mulf %20, %30 : vector<32x128xf32>
      %37 = vector.shape_cast %36 : vector<32x128xf32> to vector<4x8x128xf32>
      %cst_17 = arith.constant dense<0.000000e+00> : vector<8x128xf32>
      %38 = vector.multi_reduction <add>, %37, %cst_17 [0] : vector<4x8x128xf32> to vector<8x128xf32>
      %39 = arith.addf %35, %38 : vector<8x128xf32>
      %c0_18 = arith.constant 0 : index
      %c0_19 = arith.constant 0 : index
      %40 = vector.load %arg5[%c0_18, %c0_19] : memref<8x128xf32, #tpu.memory_space<vmem>>, vector<8x128xf32>
      tpu.vector_store %arg5[%c0_18, %c0_19], %39 {strides = array<i32>} : memref<8x128xf32, #tpu.memory_space<vmem>>, vector<8x128xf32>,
      %c0_20 = arith.constant 0 : index
      %c0_21 = arith.constant 0 : index
      %41 = vector.load %arg6[%c0_20, %c0_21] : memref<8x128xf32, #tpu.memory_space<vmem>>, vector<8x128xf32>
      %42 = arith.mulf %20, %31 : vector<32x128xf32>
      %43 = arith.subf %31, %42 : vector<32x128xf32>
      %44 = vector.shape_cast %43 : vector<32x128xf32> to vector<4x8x128xf32>
      %cst_22 = arith.constant dense<0.000000e+00> : vector<8x128xf32>
      %45 = vector.multi_reduction <add>, %44, %cst_22 [0] : vector<4x8x128xf32> to vector<8x128xf32>
      %46 = arith.addf %41, %45 : vector<8x128xf32>
      %c0_23 = arith.constant 0 : index
      %c0_24 = arith.constant 0 : index
      %47 = vector.load %arg6[%c0_23, %c0_24] : memref<8x128xf32, #tpu.memory_space<vmem>>, vector<8x128xf32>
      tpu.vector_store %arg6[%c0_23, %c0_24], %46 {strides = array<i32>} : memref<8x128xf32, #tpu.memory_space<vmem>>, vector<8x128xf32>,
      %c0_25 = arith.constant 0 : index
      %c0_26 = arith.constant 0 : index
      %48 = vector.load %arg7[%c0_25, %c0_26] : memref<8x128xf32, #tpu.memory_space<vmem>>, vector<8x128xf32>
      %49 = arith.mulf %34, %20 : vector<32x128xf32>
      %50 = vector.shape_cast %49 : vector<32x128xf32> to vector<4x8x128xf32>
      %cst_27 = arith.constant dense<0.000000e+00> : vector<8x128xf32>
      %51 = vector.multi_reduction <add>, %50, %cst_27 [0] : vector<4x8x128xf32> to vector<8x128xf32>
      %52 = arith.addf %48, %51 : vector<8x128xf32>
      %c0_28 = arith.constant 0 : index
      %c0_29 = arith.constant 0 : index
      %53 = vector.load %arg7[%c0_28, %c0_29] : memref<8x128xf32, #tpu.memory_space<vmem>>, vector<8x128xf32>
      tpu.vector_store %arg7[%c0_28, %c0_29], %52 {strides = array<i32>} : memref<8x128xf32, #tpu.memory_space<vmem>>, vector<8x128xf32>,
      %c0_30 = arith.constant 0 : index
      %c0_31 = arith.constant 0 : index
      %54 = vector.load %arg8[%c0_30, %c0_31] : memref<8x128xf32, #tpu.memory_space<vmem>>, vector<8x128xf32>
      %55 = arith.addf %34, %20 : vector<32x128xf32>
      %56 = vector.shape_cast %55 : vector<32x128xf32> to vector<4x8x128xf32>
      %cst_32 = arith.constant dense<0.000000e+00> : vector<8x128xf32>
      %57 = vector.multi_reduction <add>, %56, %cst_32 [0] : vector<4x8x128xf32> to vector<8x128xf32>
      %58 = arith.addf %54, %57 : vector<8x128xf32>
      %c0_33 = arith.constant 0 : index
      %c0_34 = arith.constant 0 : index
      %59 = vector.load %arg8[%c0_33, %c0_34] : memref<8x128xf32, #tpu.memory_space<vmem>>, vector<8x128xf32>
      tpu.vector_store %arg8[%c0_33, %c0_34], %58 {strides = array<i32>} : memref<8x128xf32, #tpu.memory_space<vmem>>, vector<8x128xf32>,
      %cst_35 = arith.constant 0xFF800000 : f32
      %60 = vector.broadcast %cst_35 : f32 to vector<32x128xf32>
      %61 = arith.select %16, %20, %60 : vector<32x128xi1>, vector<32x128xf32>
      %62 = vector.shape_cast %61 : vector<32x128xf32> to vector<1x32x128xf32>
      %cst_36 = arith.constant dense<0xFF800000> : vector<1xf32>
      %63 = vector.multi_reduction <maximumf>, %62, %cst_36 [1, 2] : vector<1x32x128xf32> to vector<1xf32>
      %64 = vector.shape_cast %63 : vector<1xf32> to vector<1x1x1xf32>
      %65 = vector.extract %64[0, 0, 0] : f32 from vector<1x1x1xf32>
      %cst_37 = arith.constant 0x7F800000 : f32
      %66 = vector.broadcast %cst_37 : f32 to vector<32x128xf32>
      %67 = arith.select %16, %20, %66 : vector<32x128xi1>, vector<32x128xf32>
      %68 = vector.shape_cast %67 : vector<32x128xf32> to vector<1x32x128xf32>
      %cst_38 = arith.constant dense<0x7F800000> : vector<1xf32>
      %69 = vector.multi_reduction <minimumf>, %68, %cst_38 [1, 2] : vector<1x32x128xf32> to vector<1xf32>
      %70 = vector.shape_cast %69 : vector<1xf32> to vector<1x1x1xf32>
      %71 = vector.extract %70[0, 0, 0] : f32 from vector<1x1x1xf32>
      %72 = vector.broadcast %65 : f32 to vector<32x128xf32>
      %73 = arith.cmpf oeq, %20, %72 : vector<32x128xf32>
      %74 = arith.andi %73, %16 : vector<32x128xi1>
      %75 = arith.extui %74 : vector<32x128xi1> to vector<32x128xi32>
      %76 = vector.shape_cast %75 : vector<32x128xi32> to vector<1x32x128xi32>
      %cst_39 = arith.constant dense<0> : vector<1xi32>
      %77 = vector.multi_reduction <add>, %76, %cst_39 [1, 2] : vector<1x32x128xi32> to vector<1xi32>
      %78 = vector.shape_cast %77 : vector<1xi32> to vector<1x1x1xi32>
      %79 = vector.extract %78[0, 0, 0] : i32 from vector<1x1x1xi32>
      %80 = vector.broadcast %71 : f32 to vector<32x128xf32>
      %81 = arith.cmpf oeq, %20, %80 : vector<32x128xf32>
      %82 = arith.andi %81, %16 : vector<32x128xi1>
      %83 = arith.extui %82 : vector<32x128xi1> to vector<32x128xi32>
      %84 = vector.shape_cast %83 : vector<32x128xi32> to vector<1x32x128xi32>
      %cst_40 = arith.constant dense<0> : vector<1xi32>
      %85 = vector.multi_reduction <add>, %84, %cst_40 [1, 2] : vector<1x32x128xi32> to vector<1xi32>
      %86 = vector.shape_cast %85 : vector<1xi32> to vector<1x1x1xi32>
      %87 = vector.extract %86[0, 0, 0] : i32 from vector<1x1x1xi32>
      %c0_41 = arith.constant 0 : index
      %88 = memref.load %arg9[%c0_41] : memref<2xf32, #tpu.memory_space<smem>>
      %c1 = arith.constant 1 : index
      %89 = memref.load %arg9[%c1] : memref<2xf32, #tpu.memory_space<smem>>
      %90 = arith.cmpf ogt, %65, %88 : f32
      %91 = arith.cmpf oeq, %65, %88 : f32
      %c0_42 = arith.constant 0 : index
      %92 = memref.load %arg10[%c0_42] : memref<2xi32, #tpu.memory_space<smem>>
      %93 = arith.addi %92, %79 : i32
      %c0_43 = arith.constant 0 : index
      %94 = memref.load %arg10[%c0_43] : memref<2xi32, #tpu.memory_space<smem>>
      %95 = arith.select %91, %93, %94 : i32
      %96 = arith.select %90, %79, %95 : i32
      %c0_44 = arith.constant 0 : index
      %97 = memref.load %arg10[%c0_44] : memref<2xi32, #tpu.memory_space<smem>>
      memref.store %96, %arg10[%c0_44] : memref<2xi32, #tpu.memory_space<smem>>
      %98 = arith.cmpf olt, %71, %89 : f32
      %99 = arith.cmpf oeq, %71, %89 : f32
      %c1_45 = arith.constant 1 : index
      %100 = memref.load %arg10[%c1_45] : memref<2xi32, #tpu.memory_space<smem>>
      %101 = arith.addi %100, %87 : i32
      %c1_46 = arith.constant 1 : index
      %102 = memref.load %arg10[%c1_46] : memref<2xi32, #tpu.memory_space<smem>>
      %103 = arith.select %99, %101, %102 : i32
      %104 = arith.select %98, %87, %103 : i32
      %c1_47 = arith.constant 1 : index
      %105 = memref.load %arg10[%c1_47] : memref<2xi32, #tpu.memory_space<smem>>
      memref.store %104, %arg10[%c1_47] : memref<2xi32, #tpu.memory_space<smem>>
      %106 = arith.maximumf %88, %65 : f32
      %c0_48 = arith.constant 0 : index
      %107 = memref.load %arg9[%c0_48] : memref<2xf32, #tpu.memory_space<smem>>
      memref.store %106, %arg9[%c0_48] : memref<2xf32, #tpu.memory_space<smem>>
      %108 = arith.minimumf %89, %71 : f32
      %c1_49 = arith.constant 1 : index
      %109 = memref.load %arg9[%c1_49] : memref<2xf32, #tpu.memory_space<smem>>
      memref.store %108, %arg9[%c1_49] : memref<2xf32, #tpu.memory_space<smem>>
    } else {
    }
    %c0_i32_8 = arith.constant 0 : i32
    %11 = arith.cmpi eq, %arg0, %c0_i32_8 : i32
    %12 = arith.extui %11 : i1 to i32
    %c0_i32_9 = arith.constant 0 : i32
    %13 = arith.cmpi ne, %12, %c0_i32_9 : i32
    scf.if %13 {
      %c0_10 = arith.constant 0 : index
      %c0_11 = arith.constant 0 : index
      %14 = vector.load %arg5[%c0_10, %c0_11] : memref<8x128xf32, #tpu.memory_space<vmem>>, vector<8x128xf32>
      %15 = vector.shape_cast %14 : vector<8x128xf32> to vector<1x8x128xf32>
      %cst = arith.constant dense<0.000000e+00> : vector<1xf32>
      %16 = vector.multi_reduction <add>, %15, %cst [1, 2] : vector<1x8x128xf32> to vector<1xf32>
      %17 = vector.shape_cast %16 : vector<1xf32> to vector<1x1x1xf32>
      %18 = vector.extract %17[0, 0, 0] : f32 from vector<1x1x1xf32>
      %c0_12 = arith.constant 0 : index
      %19 = memref.load %arg3[%c0_12] : memref<4xf32, #tpu.memory_space<smem>>
      memref.store %18, %arg3[%c0_12] : memref<4xf32, #tpu.memory_space<smem>>
      %c0_13 = arith.constant 0 : index
      %c0_14 = arith.constant 0 : index
      %20 = vector.load %arg6[%c0_13, %c0_14] : memref<8x128xf32, #tpu.memory_space<vmem>>, vector<8x128xf32>
      %21 = vector.shape_cast %20 : vector<8x128xf32> to vector<1x8x128xf32>
      %cst_15 = arith.constant dense<0.000000e+00> : vector<1xf32>
      %22 = vector.multi_reduction <add>, %21, %cst_15 [1, 2] : vector<1x8x128xf32> to vector<1xf32>
      %23 = vector.shape_cast %22 : vector<1xf32> to vector<1x1x1xf32>
      %24 = vector.extract %23[0, 0, 0] : f32 from vector<1x1x1xf32>
      %c1 = arith.constant 1 : index
      %25 = memref.load %arg3[%c1] : memref<4xf32, #tpu.memory_space<smem>>
      memref.store %24, %arg3[%c1] : memref<4xf32, #tpu.memory_space<smem>>
      %c0_16 = arith.constant 0 : index
      %c0_17 = arith.constant 0 : index
      %26 = vector.load %arg7[%c0_16, %c0_17] : memref<8x128xf32, #tpu.memory_space<vmem>>, vector<8x128xf32>
      %27 = vector.shape_cast %26 : vector<8x128xf32> to vector<1x8x128xf32>
      %cst_18 = arith.constant dense<0.000000e+00> : vector<1xf32>
      %28 = vector.multi_reduction <add>, %27, %cst_18 [1, 2] : vector<1x8x128xf32> to vector<1xf32>
      %29 = vector.shape_cast %28 : vector<1xf32> to vector<1x1x1xf32>
      %30 = vector.extract %29[0, 0, 0] : f32 from vector<1x1x1xf32>
      %c2 = arith.constant 2 : index
      %31 = memref.load %arg3[%c2] : memref<4xf32, #tpu.memory_space<smem>>
      memref.store %30, %arg3[%c2] : memref<4xf32, #tpu.memory_space<smem>>
      %c0_19 = arith.constant 0 : index
      %c0_20 = arith.constant 0 : index
      %32 = vector.load %arg8[%c0_19, %c0_20] : memref<8x128xf32, #tpu.memory_space<vmem>>, vector<8x128xf32>
      %33 = vector.shape_cast %32 : vector<8x128xf32> to vector<1x8x128xf32>
      %cst_21 = arith.constant dense<0.000000e+00> : vector<1xf32>
      %34 = vector.multi_reduction <add>, %33, %cst_21 [1, 2] : vector<1x8x128xf32> to vector<1xf32>
      %35 = vector.shape_cast %34 : vector<1xf32> to vector<1x1x1xf32>
      %36 = vector.extract %35[0, 0, 0] : f32 from vector<1x1x1xf32>
      %c3 = arith.constant 3 : index
      %37 = memref.load %arg3[%c3] : memref<4xf32, #tpu.memory_space<smem>>
      memref.store %36, %arg3[%c3] : memref<4xf32, #tpu.memory_space<smem>>
      %c0_22 = arith.constant 0 : index
      %38 = memref.load %arg10[%c0_22] : memref<2xi32, #tpu.memory_space<smem>>
      %c0_23 = arith.constant 0 : index
      %39 = memref.load %arg4[%c0_23] : memref<2xi32, #tpu.memory_space<smem>>
      memref.store %38, %arg4[%c0_23] : memref<2xi32, #tpu.memory_space<smem>>
      %c1_24 = arith.constant 1 : index
      %40 = memref.load %arg10[%c1_24] : memref<2xi32, #tpu.memory_space<smem>>
      %c1_25 = arith.constant 1 : index
      %41 = memref.load %arg4[%c1_25] : memref<2xi32, #tpu.memory_space<smem>>
      memref.store %40, %arg4[%c1_25] : memref<2xi32, #tpu.memory_space<smem>>
    } else {
    }
    return
  }
  func.func @transform_0(%arg0: i32) -> (i32, i32) {
    %c0_i32 = arith.constant 0 : i32
    %c0_i32_0 = arith.constant 0 : i32
    return %arg0, %c0_i32 : i32, i32
  }
  func.func @transform_1(%arg0: i32) -> (i32, i32) {
    %c0_i32 = arith.constant 0 : i32
    %c0_i32_0 = arith.constant 0 : i32
    return %arg0, %c0_i32 : i32, i32
  }
  func.func @transform_2(%arg0: i32) -> i32 {
    %c0_i32 = arith.constant 0 : i32
    %c0_i32_0 = arith.constant 0 : i32
    return %c0_i32 : i32
  }
  func.func @transform_3(%arg0: i32) -> i32 {
    %c0_i32 = arith.constant 0 : i32
    %c0_i32_0 = arith.constant 0 : i32
    return %c0_i32 : i32
  }
}

</mosaic_0001>

<llo_original>
// kernel: squeeze.7
$region0: #{squeeze.7}
  %s0 = inlined_call_operand.hbm [shape: f32[2,1,16,16], index: 0, kind: input, shape index: {}]
  %s1 = inlined_call_operand.vmem [shape: f32[4,128], index: 1, kind: output, shape index: {}]
  $region1: #{squeeze.7} parent=0
    #allocation0 [shape = 'u8[16384]{0}', space=vmem, size = 0x4000, scoped, tag = 'operand span for operand 0']
    #allocation1 [shape = 's32[1]{0}', space=sflag, size = 0x4, scoped, tag = 'scoped memory for squeeze.7']
    #allocation2 [shape = 'u8[4096]{0}', space=vmem, size = 0x1000, scoped, tag = 'scoped mem for output reshape']
    %2 = vsyncpa [#allocation1], 0
    %s4 = ssub.s32 512, 512
    %5 = vsyncadd [#allocation1], %s4
    %s7 = sshll.u32 [#allocation0], 4
    %s8 = int_to_ptr.vmem [resolvable:$true] %s7
    %10 = dma.hbm_to_vmem [thread:$0]  %s0, 512, %s8, [#allocation1]
    %11 = dma.done [#allocation1], 512
    %v12 = vld [vmem:[#allocation0] ss:$8 sm:$0xf]
    %vm13 = vcmask 130048
    %14 = vst.msk [vmem:[#allocation2] sm:$0xf] %vm13, %v12
    %s15 = scalar_lea.vmem [#allocation0], 7
    %v16 = vld [vmem:[%s15] ss:$8 sm:$0xf]
    %17 = vrot.lane.b32.xlu0 %v16, 112
    %v18 = vpop.permute.xlu0 %17
    %vm19 = vcmask 1048448
    %20 = vst.msk [vmem:[#allocation2] sm:$0xf] %vm19, %v18
    %s21 = scalar_lea.vmem [#allocation0], 6
    %v22 = vld [vmem:[%s21] ss:$8 sm:$0xf]
    %23 = vrot.lane.b32.xlu0 %v22, 96
    %v24 = vpop.permute.xlu0 %23
    %vm25 = vcmask 917248
    %26 = vst.msk [vmem:[#allocation2] sm:$0xf] %vm25, %v24
    %s27 = scalar_lea.vmem [#allocation0], 5
    %v28 = vld [vmem:[%s27] ss:$8 sm:$0xf]
    %29 = vrot.lane.b32.xlu0 %v28, 80
    %v30 = vpop.permute.xlu0 %29
    %vm31 = vcmask 786048
    %32 = vst.msk [vmem:[#allocation2] sm:$0xf] %vm31, %v30
    %s33 = scalar_lea.vmem [#allocation0], 4
    %v34 = vld [vmem:[%s33] ss:$8 sm:$0xf]
    %35 = vrot.lane.b32.xlu0 %v34, 64
    %v36 = vpop.permute.xlu0 %35
    %vm37 = vcmask 654848
    %38 = vst.msk [vmem:[#allocation2] sm:$0xf] %vm37, %v36
    %s39 = scalar_lea.vmem [#allocation0], 3
    %v40 = vld [vmem:[%s39] ss:$8 sm:$0xf]
    %41 = vrot.lane.b32.xlu0 %v40, 48
    %v42 = vpop.permute.xlu0 %41
    %vm43 = vcmask 523648
    %44 = vst.msk [vmem:[#allocation2] sm:$0xf] %vm43, %v42
    %s45 = scalar_lea.vmem [#allocation0], 2
    %v46 = vld [vmem:[%s45] ss:$8 sm:$0xf]
    %47 = vrot.lane.b32.xlu0 %v46, 32
    %v48 = vpop.permute.xlu0 %47
    %vm49 = vcmask 392448
    %50 = vst.msk [vmem:[#allocation2] sm:$0xf] %vm49, %v48
    %s51 = scalar_lea.vmem [#allocation0], 1
    %v52 = vld [vmem:[%s51] ss:$8 sm:$0xf]
    %53 = vrot.lane.b32.xlu0 %v52, 16
    %v54 = vpop.permute.xlu0 %53
    %vm55 = vcmask 261248
    %56 = vst.msk [vmem:[#allocation2] sm:$0xf] %vm55, %v54
    %s58 = sshll.u32 1, 4
    %s59 = ssub.s32 %s58, 1
    %v61 = vld [vmem:[#allocation2] sm:%s59]
    %s62 = sshll.u32 1, 4
    %s63 = ssub.s32 %s62, 1
    %64 = vst [vmem:[%s1] sm:%s63] %v61
    %65 = vsyncpa [#allocation1], 1

// kernel: combined_loss_average.1
$region0: #{combined_loss_average.1}
  #allocation0 [shape = 'u32[]', space=smem, size = 0x4, offset = 0x4, fixed_abs, tag = 'smem constant byte address 0x4 - core index']
  #allocation1 [shape = 'u32[144,128]{1,0:T(1,128)}', space=vmem, size = 0x12000, scoped, tag = 'internal scratch']
  #allocation2 [shape = 'f32[8,128]{1,0:T(8,128)}', space=vmem, size = 0x1000, scoped, tag = 'scratch operand']
  #allocation3 [shape = 'f32[8,128]{1,0:T(8,128)}', space=vmem, size = 0x1000, scoped, tag = 'scratch operand']
  #allocation4 [shape = 'f32[8,128]{1,0:T(8,128)}', space=vmem, size = 0x1000, scoped, tag = 'scratch operand']
  #allocation5 [shape = 'f32[8,128]{1,0:T(8,128)}', space=vmem, size = 0x1000, scoped, tag = 'scratch operand']
  #allocation6 [shape = 'f32[2]{0:T(128)}', space=smem, size = 0x200, scoped, tag = 'scratch operand']
  #allocation7 [shape = 's32[2]{0:T(128)}', space=smem, size = 0x200, scoped, tag = 'scratch operand']
  %s0 = inlined_call_operand.vmem [shape: f32[4,128], index: 0, kind: input, shape index: {}]
  %s1 = inlined_call_operand.vmem [shape: f32[4,128], index: 1, kind: input, shape index: {}]
  %s2 = inlined_call_operand.vmem [shape: f32[4], index: 2, kind: output, shape index: {0}]
  %s3 = inlined_call_operand.vmem [shape: s32[2], index: 3, kind: output, shape index: {1}]
  %4 = xla_tuple %s2, %s3
  %s5 = sld [smem:[#allocation0]]
  $region38: #{combined_loss_average.1} parent=0
    _
  %s7 = ssub.s32 1, %s5
  %s8 = scalar_select 0, %s7, %s5
  $region1: #{combined_loss_average.1} parent=0
    #allocation8 [shape = 'u8[512]{0}', space=smem, size = 0x200, scoped, tag = 'output window, operand 0, single buffered']
    #allocation9 [shape = 's32[1]{0}', space=sflag, size = 0x4, scoped, tag = 'scoped memory for combined_loss_average.1']
    #allocation10 [shape = 'u8[512]{0}', space=smem, size = 0x200, scoped, tag = 'output window, operand 1, single buffered']
    #allocation11 [shape = 's32[1]{0}', space=sflag, size = 0x4, scoped, tag = 'scoped memory for combined_loss_average.1']
    %9 = vsyncpa [#allocation9], 0
    %10 = vsyncpa [#allocation11], 0
    // Predicated region
    $region2: #{combined_loss_average.1} parent=1 // pred_check
      _
    $region3: #{combined_loss_average.1} parent=1 // pred_check_branch
      %12 = sbr.rel (0) target = $region5
    $region4: #{combined_loss_average.1} parent=1 // pred_region
      _
    $region5: #{combined_loss_average.1} parent=1 // pred_fallthru
      _
    // Predicated region
    $region6: #{combined_loss_average.1} parent=1 // pred_check
      _
    $region7: #{combined_loss_average.1} parent=1 // pred_check_branch
      %14 = sbr.rel (0) target = $region9
    $region8: #{combined_loss_average.1} parent=1 // pred_region
      _
    $region9: #{combined_loss_average.1} parent=1 // pred_fallthru
      _
    %p15 = scmp.eq.s32.totalorder 0, 0
    // Predicated region
    $region10: #{combined_loss_average.1} parent=1 // pred_check
      %p16 = pneg %p15
    $region11: #{combined_loss_average.1} parent=1 // pred_check_branch
      %18 = sbr.rel (%p16) target = $region13
    $region12: #{combined_loss_average.1} parent=1 // pred_region
      %19 = vst [vmem:[#allocation2] sm:$0xff] 0.0
      %20 = vst [vmem:[#allocation3] sm:$0xff] 0.0
      %21 = vst [vmem:[#allocation4] sm:$0xff] 0.0
      %22 = vst [vmem:[#allocation5] sm:$0xff] 0.0
      %s23 = scalar_lea.smem [#allocation6], 0
      %24 = sst [smem:[%s23]] -inf
      %s25 = scalar_lea.smem [#allocation6], 1
      %26 = sst [smem:[%s25]] inf
      %s27 = scalar_lea.smem [#allocation7], 0
      %28 = sst [smem:[%s27]] 0
      %s29 = scalar_lea.smem [#allocation7], 1
      %30 = sst [smem:[%s29]] 0
    $region13: #{combined_loss_average.1} parent=1 // pred_fallthru
      _
    %v31 = vld [vmem:[%s0] sm:$0xff]
    %v32 = vld [vmem:[%s0 + $0x8] sm:$0xff]
    %v33 = vld [vmem:[%s0 + $0x10] sm:$0xff]
    %v34 = vld [vmem:[%s0 + $0x18] sm:$0xff]
    %v35 = vld [vmem:[%s1] sm:$0xff]
    %v36 = vld [vmem:[%s1 + $0x8] sm:$0xff]
    %v37 = vld [vmem:[%s1 + $0x10] sm:$0xff]
    %v38 = vld [vmem:[%s1 + $0x18] sm:$0xff]
    %p39 = scmp.lt.s32.totalorder 0, 0
    // Predicated region
    $region14: #{combined_loss_average.1} parent=1 // pred_check
      %p40 = pneg %p39
    $region15: #{combined_loss_average.1} parent=1 // pred_check_branch
      %42 = sbr.rel (%p40) target = $region17
    $region16: #{combined_loss_average.1} parent=1 // pred_region
      %v43 = vand.u32 2147483647, %v31
      %v44 = vand.u32 2147483647, %v32
      %v45 = vand.u32 2147483647, %v33
      %v46 = vand.u32 2147483647, %v34
      %v47 = vsub.f32 0.0, %v43
      %v48 = vsub.f32 0.0, %v44
      %v49 = vsub.f32 0.0, %v45
      %v50 = vsub.f32 0.0, %v46
      %v51 = vmul.f32 %v47, 1.442695
      %v52 = vpow.pop %v51
      %v53 = vmul.f32 %v48, 1.442695
      %v54 = vpow.pop %v53
      %v55 = vmul.f32 %v49, 1.442695
      %v56 = vpow.pop %v55
      %v57 = vmul.f32 %v50, 1.442695
      %v58 = vpow.pop %v57
      %v59 = vsub.f32 0.0, %v31
      %v60 = vsub.f32 0.0, %v32
      %v61 = vsub.f32 0.0, %v33
      %v62 = vsub.f32 0.0, %v34
      %v63 = vmax.f32 %v59, 0.0
      %v64 = vmax.f32 %v60, 0.0
      %v65 = vmax.f32 %v61, 0.0
      %v66 = vmax.f32 %v62, 0.0
      %v67 = vadd.f32 %v52, 1.0
      %v68 = vlog2.pop %v67
      %v69 = vmul.f32 %v68, 0.6931472
      %v70 = vmul.f32 -0.5, %v52
      %v71 = vadd.f32 %v70, 1.0
      %v72 = vmul.f32 %v71, %v52
      %v73 = vand.u32 2147483647, %v52
      %vm74 = vcmp.lt.f32.partialorder %v73, 0.0004427343
      %v75 = vsel %vm74, %v72, %v69
      %v76 = vadd.f32 %v54, 1.0
      %v77 = vlog2.pop %v76
      %v78 = vmul.f32 %v77, 0.6931472
      %v79 = vmul.f32 -0.5, %v54
      %v80 = vadd.f32 %v79, 1.0
      %v81 = vmul.f32 %v80, %v54
      %v82 = vand.u32 2147483647, %v54
      %vm83 = vcmp.lt.f32.partialorder %v82, 0.0004427343
      %v84 = vsel %vm83, %v81, %v78
      %v85 = vadd.f32 %v56, 1.0
      %v86 = vlog2.pop %v85
      %v87 = vmul.f32 %v86, 0.6931472
      %v88 = vmul.f32 -0.5, %v56
      %v89 = vadd.f32 %v88, 1.0
      %v90 = vmul.f32 %v89, %v56
      %v91 = vand.u32 2147483647, %v56
      %vm92 = vcmp.lt.f32.partialorder %v91, 0.0004427343
      %v93 = vsel %vm92, %v90, %v87
      %v94 = vadd.f32 %v58, 1.0
      %v95 = vlog2.pop %v94
      %v96 = vmul.f32 %v95, 0.6931472
      %v97 = vmul.f32 -0.5, %v58
      %v98 = vadd.f32 %v97, 1.0
      %v99 = vmul.f32 %v98, %v58
      %v100 = vand.u32 2147483647, %v58
      %vm101 = vcmp.lt.f32.partialorder %v100, 0.0004427343
      %v102 = vsel %vm101, %v99, %v96
      %v103 = vadd.f32 %v63, %v75
      %v104 = vadd.f32 %v64, %v84
      %v105 = vadd.f32 %v65, %v93
      %v106 = vadd.f32 %v66, %v102
      %v107 = vadd.f32 %v31, %v103
      %v108 = vadd.f32 %v32, %v104
      %v109 = vadd.f32 %v33, %v105
      %v110 = vadd.f32 %v34, %v106
      %v111 = vsub.f32 0.0, %v103
      %v112 = vsub.f32 0.0, %v104
      %v113 = vsub.f32 0.0, %v105
      %v114 = vsub.f32 0.0, %v106
      %v115 = vmul.f32 %v111, 1.442695
      %v116 = vpow.pop %v115
      %v117 = vmul.f32 %v112, 1.442695
      %v118 = vpow.pop %v117
      %v119 = vmul.f32 %v113, 1.442695
      %v120 = vpow.pop %v119
      %v121 = vmul.f32 %v114, 1.442695
      %v122 = vpow.pop %v121
      %v123 = vld [vmem:[#allocation2] sm:$0xff]
      %v124 = vmul.f32 %v35, %v103
      %v125 = vmul.f32 %v36, %v104
      %v126 = vmul.f32 %v37, %v105
      %v127 = vmul.f32 %v38, %v106
      %v128 = vadd.f32 %v124, %v125
      %v129 = vadd.f32 %v128, %v126
      %v130 = vadd.f32 %v129, %v127
      %v131 = vadd.f32 %v123, %v130
      %132 = vst [vmem:[#allocation2] sm:$0xff] %v131
      %v133 = vld [vmem:[#allocation3] sm:$0xff]
      %v134 = vmul.f32 %v35, %v107
      %v135 = vmul.f32 %v36, %v108
      %v136 = vmul.f32 %v37, %v109
      %v137 = vmul.f32 %v38, %v110
      %v138 = vsub.f32 %v107, %v134
      %v139 = vsub.f32 %v108, %v135
      %v140 = vsub.f32 %v109, %v136
      %v141 = vsub.f32 %v110, %v137
      %v142 = vadd.f32 %v138, %v139
      %v143 = vadd.f32 %v142, %v140
      %v144 = vadd.f32 %v143, %v141
      %v145 = vadd.f32 %v133, %v144
      %146 = vst [vmem:[#allocation3] sm:$0xff] %v145
      %v147 = vld [vmem:[#allocation4] sm:$0xff]
      %v148 = vmul.f32 %v116, %v35
      %v149 = vmul.f32 %v118, %v36
      %v150 = vmul.f32 %v120, %v37
      %v151 = vmul.f32 %v122, %v38
      %v152 = vadd.f32 %v148, %v149
      %v153 = vadd.f32 %v152, %v150
      %v154 = vadd.f32 %v153, %v151
      %v155 = vadd.f32 %v147, %v154
      %156 = vst [vmem:[#allocation4] sm:$0xff] %v155
      %v157 = vld [vmem:[#allocation5] sm:$0xff]
      %v158 = vadd.f32 %v116, %v35
      %v159 = vadd.f32 %v118, %v36
      %v160 = vadd.f32 %v120, %v37
      %v161 = vadd.f32 %v122, %v38
      %v162 = vadd.f32 %v158, %v159
      %v163 = vadd.f32 %v162, %v160
      %v164 = vadd.f32 %v163, %v161
      %v165 = vadd.f32 %v157, %v164
      %166 = vst [vmem:[#allocation5] sm:$0xff] %v165
      %v167 = vmax.f32 %v35, %v36
      %v168 = vmax.f32 %v37, %v38
      %v169 = vmax.f32 %v167, %v168
      %170 = vmax.xlane.f32.xlu0 %v169
      %v171 = vpop.xlane.xlu0 %170
      %v172 = vrot.slane %v171, 4
      %v173 = vmax.f32 %v171, %v172
      %v174 = vrot.slane %v173, 2
      %v175 = vmax.f32 %v173, %v174
      %v176 = vrot.slane %v175, 1
      %v177 = vmax.f32 %v175, %v176
      %s178 = vtos %v177
      %v179 = vmin.f32 %v35, %v36
      %v180 = vmin.f32 %v37, %v38
      %v181 = vmin.f32 %v179, %v180
      %182 = vmin.xlane.f32.xlu0 %v181
      %v183 = vpop.xlane.xlu0 %182
      %v184 = vrot.slane %v183, 4
      %v185 = vmin.f32 %v183, %v184
      %v186 = vrot.slane %v185, 2
      %v187 = vmin.f32 %v185, %v186
      %v188 = vrot.slane %v187, 1
      %v189 = vmin.f32 %v187, %v188
      %s190 = vtos %v189
      %v191 = vstv %s178
      %vm192 = vcmp.eq.f32.partialorder %v35, %v191
      %vm193 = vcmp.eq.f32.partialorder %v36, %v191
      %vm194 = vcmp.eq.f32.partialorder %v37, %v191
      %vm195 = vcmp.eq.f32.partialorder %v38, %v191
      %v196 = vsel %vm192, 1, 0
      %v197 = vsel %vm193, 1, 0
      %v198 = vsel %vm194, 1, 0
      %v199 = vsel %vm195, 1, 0
      %v200 = vadd.s32 %v196, %v197
      %v201 = vadd.s32 %v198, %v199
      %v202 = vadd.s32 %v200, %v201
      %v203 = vand.u32 %v202, 65535
      %v204 = vshrl.u32 %v202, 16
      %v205 = vcvt.s32.f32 %v203
      %v206 = vcvt.s32.f32 %v204
      %207 = vadd.xlane.f32.xlu0 %v205
      %v208 = vpop.xlane.xlu0 %207
      %209 = vadd.xlane.f32.xlu0 %v206
      %v210 = vpop.xlane.xlu0 %209
      %v211 = vcvt.f32.s32 %v208
      %v212 = vcvt.f32.s32 %v210
      %v213 = vshll.u32 %v212, 16
      %v214 = vadd.s32 %v213, %v211
      %v215 = vrot.slane %v214, 4
      %v216 = vadd.s32 %v214, %v215
      %v217 = vrot.slane %v216, 2
      %v218 = vadd.s32 %v216, %v217
      %v219 = vrot.slane %v218, 1
      %v220 = vadd.s32 %v218, %v219
      %s221 = vtos %v220
      %v222 = vstv %s190
      %vm223 = vcmp.eq.f32.partialorder %v35, %v222
      %vm224 = vcmp.eq.f32.partialorder %v36, %v222
      %vm225 = vcmp.eq.f32.partialorder %v37, %v222
      %vm226 = vcmp.eq.f32.partialorder %v38, %v222
      %v227 = vsel %vm223, 1, 0
      %v228 = vsel %vm224, 1, 0
      %v229 = vsel %vm225, 1, 0
      %v230 = vsel %vm226, 1, 0
      %v231 = vadd.s32 %v227, %v228
      %v232 = vadd.s32 %v229, %v230
      %v233 = vadd.s32 %v231, %v232
      %v234 = vand.u32 %v233, 65535
      %v235 = vshrl.u32 %v233, 16
      %v236 = vcvt.s32.f32 %v234
      %v237 = vcvt.s32.f32 %v235
      %238 = vadd.xlane.f32.xlu0 %v236
      %v239 = vpop.xlane.xlu0 %238
      %240 = vadd.xlane.f32.xlu0 %v237
      %v241 = vpop.xlane.xlu0 %240
      %v242 = vcvt.f32.s32 %v239
      %v243 = vcvt.f32.s32 %v241
      %v244 = vshll.u32 %v243, 16
      %v245 = vadd.s32 %v244, %v242
      %v246 = vrot.slane %v245, 4
      %v247 = vadd.s32 %v245, %v246
      %v248 = vrot.slane %v247, 2
      %v249 = vadd.s32 %v247, %v248
      %v250 = vrot.slane %v249, 1
      %v251 = vadd.s32 %v249, %v250
      %s252 = vtos %v251
      %s253 = sld [smem:[#allocation6]]
      %s254 = sld [smem:[#allocation6 + $0x1]]
      %p255 = scmp.gt.f32.partialorder %s178, %s253
      %p256 = scmp.eq.f32.partialorder %s178, %s253
      %s257 = sld [smem:[#allocation7]]
      %s258 = sadd.s32 %s257, %s221
      %s259 = scalar_select %p256, %s258, %s257
      %s260 = scalar_select %p255, %s221, %s259
      %s261 = scalar_lea.smem [#allocation7], 0
      %262 = sst [smem:[%s261]] %s260
      %p263 = scmp.lt.f32.partialorder %s190, %s254
      %p264 = scmp.eq.f32.partialorder %s190, %s254
      %s265 = sld [smem:[#allocation7 + $0x1]]
      %s266 = sadd.s32 %s265, %s252
      %s267 = scalar_select %p264, %s266, %s265
      %s268 = scalar_select %p263, %s252, %s267
      %s269 = scalar_lea.smem [#allocation7], 1
      %270 = sst [smem:[%s269]] %s268
      %s271 = smax.f32 %s253, %s178
      %s272 = scalar_lea.smem [#allocation6], 0
      %273 = sst [smem:[%s272]] %s271
      %s274 = smin.f32 %s254, %s190
      %s275 = scalar_lea.smem [#allocation6], 1
      %276 = sst [smem:[%s275]] %s274
    $region17: #{combined_loss_average.1} parent=1 // pred_fallthru
      _
    // Predicated region
    $region18: #{combined_loss_average.1} parent=1 // pred_check
      %p277 = pneg %p15
    $region19: #{combined_loss_average.1} parent=1 // pred_check_branch
      %279 = sbr.rel (%p277) target = $region21
    $region20: #{combined_loss_average.1} parent=1 // pred_region
      %v280 = vlaneseq
      %v281 = vshrl.u32 %v280, 7
      %v282 = vadd.s32 %v281, 8
      %v283 = vadd.s32 %v281, 16
      %v284 = vadd.s32 %v281, 24
      %vm285 = vcmp.lt.s32.totalorder %v281, 4
      %vm286 = vcmp.lt.s32.totalorder %v282, 4
      %vm287 = vcmp.lt.s32.totalorder %v283, 4
      %vm288 = vcmp.lt.s32.totalorder %v284, 4
      %v289 = vsel %vm285, %v31, -10000.0
      %v290 = vsel %vm286, %v32, -10000.0
      %v291 = vsel %vm287, %v33, -10000.0
      %v292 = vsel %vm288, %v34, -10000.0
      %v293 = vsel %vm285, %v35, 0.0
      %v294 = vsel %vm286, %v36, 0.0
      %v295 = vsel %vm287, %v37, 0.0
      %v296 = vsel %vm288, %v38, 0.0
      %v297 = vand.u32 2147483647, %v289
      %v298 = vand.u32 2147483647, %v290
      %v299 = vand.u32 2147483647, %v291
      %v300 = vand.u32 2147483647, %v292
      %v301 = vsub.f32 0.0, %v297
      %v302 = vsub.f32 0.0, %v298
      %v303 = vsub.f32 0.0, %v299
      %v304 = vsub.f32 0.0, %v300
      %v305 = vmul.f32 %v301, 1.442695
      %v306 = vpow.pop %v305
      %v307 = vmul.f32 %v302, 1.442695
      %v308 = vpow.pop %v307
      %v309 = vmul.f32 %v303, 1.442695
      %v310 = vpow.pop %v309
      %v311 = vmul.f32 %v304, 1.442695
      %v312 = vpow.pop %v311
      %v313 = vsub.f32 0.0, %v289
      %v314 = vsub.f32 0.0, %v290
      %v315 = vsub.f32 0.0, %v291
      %v316 = vsub.f32 0.0, %v292
      %v317 = vmax.f32 %v313, 0.0
      %v318 = vmax.f32 %v314, 0.0
      %v319 = vmax.f32 %v315, 0.0
      %v320 = vmax.f32 %v316, 0.0
      %v321 = vadd.f32 %v306, 1.0
      %v322 = vlog2.pop %v321
      %v323 = vmul.f32 %v322, 0.6931472
      %v324 = vmul.f32 -0.5, %v306
      %v325 = vadd.f32 %v324, 1.0
      %v326 = vmul.f32 %v325, %v306
      %v327 = vand.u32 2147483647, %v306
      %vm328 = vcmp.lt.f32.partialorder %v327, 0.0004427343
      %v329 = vsel %vm328, %v326, %v323
      %v330 = vadd.f32 %v308, 1.0
      %v331 = vlog2.pop %v330
      %v332 = vmul.f32 %v331, 0.6931472
      %v333 = vmul.f32 -0.5, %v308
      %v334 = vadd.f32 %v333, 1.0
      %v335 = vmul.f32 %v334, %v308
      %v336 = vand.u32 2147483647, %v308
      %vm337 = vcmp.lt.f32.partialorder %v336, 0.0004427343
      %v338 = vsel %vm337, %v335, %v332
      %v339 = vadd.f32 %v310, 1.0
      %v340 = vlog2.pop %v339
      %v341 = vmul.f32 %v340, 0.6931472
      %v342 = vmul.f32 -0.5, %v310
      %v343 = vadd.f32 %v342, 1.0
      %v344 = vmul.f32 %v343, %v310
      %v345 = vand.u32 2147483647, %v310
      %vm346 = vcmp.lt.f32.partialorder %v345, 0.0004427343
      %v347 = vsel %vm346, %v344, %v341
      %v348 = vadd.f32 %v312, 1.0
      %v349 = vlog2.pop %v348
      %v350 = vmul.f32 %v349, 0.6931472
      %v351 = vmul.f32 -0.5, %v312
      %v352 = vadd.f32 %v351, 1.0
      %v353 = vmul.f32 %v352, %v312
      %v354 = vand.u32 2147483647, %v312
      %vm355 = vcmp.lt.f32.partialorder %v354, 0.0004427343
      %v356 = vsel %vm355, %v353, %v350
      %v357 = vadd.f32 %v317, %v329
      %v358 = vadd.f32 %v318, %v338
      %v359 = vadd.f32 %v319, %v347
      %v360 = vadd.f32 %v320, %v356
      %v361 = vadd.f32 %v289, %v357
      %v362 = vadd.f32 %v290, %v358
      %v363 = vadd.f32 %v291, %v359
      %v364 = vadd.f32 %v292, %v360
      %v365 = vsub.f32 0.0, %v357
      %v366 = vsub.f32 0.0, %v358
      %v367 = vsub.f32 0.0, %v359
      %v368 = vsub.f32 0.0, %v360
      %v369 = vmul.f32 %v365, 1.442695
      %v370 = vpow.pop %v369
      %v371 = vmul.f32 %v366, 1.442695
      %v372 = vpow.pop %v371
      %v373 = vmul.f32 %v367, 1.442695
      %v374 = vpow.pop %v373
      %v375 = vmul.f32 %v368, 1.442695
      %v376 = vpow.pop %v375
      %v377 = vld [vmem:[#allocation2] sm:$0xff]
      %v378 = vmul.f32 %v293, %v357
      %v379 = vmul.f32 %v294, %v358
      %v380 = vmul.f32 %v295, %v359
      %v381 = vmul.f32 %v296, %v360
      %v382 = vadd.f32 %v378, %v379
      %v383 = vadd.f32 %v382, %v380
      %v384 = vadd.f32 %v383, %v381
      %v385 = vadd.f32 %v377, %v384
      %386 = vst [vmem:[#allocation2] sm:$0xff] %v385
      %v387 = vld [vmem:[#allocation3] sm:$0xff]
      %v388 = vmul.f32 %v293, %v361
      %v389 = vmul.f32 %v294, %v362
      %v390 = vmul.f32 %v295, %v363
      %v391 = vmul.f32 %v296, %v364
      %v392 = vsub.f32 %v361, %v388
      %v393 = vsub.f32 %v362, %v389
      %v394 = vsub.f32 %v363, %v390
      %v395 = vsub.f32 %v364, %v391
      %v396 = vadd.f32 %v392, %v393
      %v397 = vadd.f32 %v396, %v394
      %v398 = vadd.f32 %v397, %v395
      %v399 = vadd.f32 %v387, %v398
      %400 = vst [vmem:[#allocation3] sm:$0xff] %v399
      %v401 = vld [vmem:[#allocation4] sm:$0xff]
      %v402 = vmul.f32 %v370, %v293
      %v403 = vmul.f32 %v372, %v294
      %v404 = vmul.f32 %v374, %v295
      %v405 = vmul.f32 %v376, %v296
      %v406 = vadd.f32 %v402, %v403
      %v407 = vadd.f32 %v406, %v404
      %v408 = vadd.f32 %v407, %v405
      %v409 = vadd.f32 %v401, %v408
      %410 = vst [vmem:[#allocation4] sm:$0xff] %v409
      %v411 = vld [vmem:[#allocation5] sm:$0xff]
      %v412 = vadd.f32 %v370, %v293
      %v413 = vadd.f32 %v372, %v294
      %v414 = vadd.f32 %v374, %v295
      %v415 = vadd.f32 %v376, %v296
      %v416 = vadd.f32 %v412, %v413
      %v417 = vadd.f32 %v416, %v414
      %v418 = vadd.f32 %v417, %v415
      %v419 = vadd.f32 %v411, %v418
      %420 = vst [vmem:[#allocation5] sm:$0xff] %v419
      %v421 = vsel %vm285, %v35, -inf
      %v422 = vsel %vm286, %v36, -inf
      %v423 = vsel %vm287, %v37, -inf
      %v424 = vsel %vm288, %v38, -inf
      %v425 = vmax.f32 %v421, %v422
      %v426 = vmax.f32 %v423, %v424
      %v427 = vmax.f32 %v425, %v426
      %428 = vmax.xlane.f32.xlu0 %v427
      %v429 = vpop.xlane.xlu0 %428
      %v430 = vrot.slane %v429, 4
      %v431 = vmax.f32 %v429, %v430
      %v432 = vrot.slane %v431, 2
      %v433 = vmax.f32 %v431, %v432
      %v434 = vrot.slane %v433, 1
      %v435 = vmax.f32 %v433, %v434
      %s436 = vtos %v435
      %v437 = vsel %vm285, %v35, inf
      %v438 = vsel %vm286, %v36, inf
      %v439 = vsel %vm287, %v37, inf
      %v440 = vsel %vm288, %v38, inf
      %v441 = vmin.f32 %v437, %v438
      %v442 = vmin.f32 %v439, %v440
      %v443 = vmin.f32 %v441, %v442
      %444 = vmin.xlane.f32.xlu0 %v443
      %v445 = vpop.xlane.xlu0 %444
      %v446 = vrot.slane %v445, 4
      %v447 = vmin.f32 %v445, %v446
      %v448 = vrot.slane %v447, 2
      %v449 = vmin.f32 %v447, %v448
      %v450 = vrot.slane %v449, 1
      %v451 = vmin.f32 %v449, %v450
      %s452 = vtos %v451
      %v453 = vstv %s436
      %vm454 = vcmp.eq.f32.partialorder %v293, %v453
      %vm455 = vcmp.eq.f32.partialorder %v294, %v453
      %vm456 = vcmp.eq.f32.partialorder %v295, %v453
      %vm457 = vcmp.eq.f32.partialorder %v296, %v453
      %vm458 = vmand %vm454, %vm285
      %vm459 = vmand %vm455, %vm286
      %vm460 = vmand %vm456, %vm287
      %vm461 = vmand %vm457, %vm288
      %v462 = vsel %vm458, 1, 0
      %v463 = vsel %vm459, 1, 0
      %v464 = vsel %vm460, 1, 0
      %v465 = vsel %vm461, 1, 0
      %v466 = vadd.s32 %v462, %v463
      %v467 = vadd.s32 %v464, %v465
      %v468 = vadd.s32 %v466, %v467
      %v469 = vand.u32 %v468, 65535
      %v470 = vshrl.u32 %v468, 16
      %v471 = vcvt.s32.f32 %v469
      %v472 = vcvt.s32.f32 %v470
      %473 = vadd.xlane.f32.xlu0 %v471
      %v474 = vpop.xlane.xlu0 %473
      %475 = vadd.xlane.f32.xlu0 %v472
      %v476 = vpop.xlane.xlu0 %475
      %v477 = vcvt.f32.s32 %v474
      %v478 = vcvt.f32.s32 %v476
      %v479 = vshll.u32 %v478, 16
      %v480 = vadd.s32 %v479, %v477
      %v481 = vrot.slane %v480, 4
      %v482 = vadd.s32 %v480, %v481
      %v483 = vrot.slane %v482, 2
      %v484 = vadd.s32 %v482, %v483
      %v485 = vrot.slane %v484, 1
      %v486 = vadd.s32 %v484, %v485
      %s487 = vtos %v486
      %v488 = vstv %s452
      %vm489 = vcmp.eq.f32.partialorder %v293, %v488
      %vm490 = vcmp.eq.f32.partialorder %v294, %v488
      %vm491 = vcmp.eq.f32.partialorder %v295, %v488
      %vm492 = vcmp.eq.f32.partialorder %v296, %v488
      %vm493 = vmand %vm489, %vm285
      %vm494 = vmand %vm490, %vm286
      %vm495 = vmand %vm491, %vm287
      %vm496 = vmand %vm492, %vm288
      %v497 = vsel %vm493, 1, 0
      %v498 = vsel %vm494, 1, 0
      %v499 = vsel %vm495, 1, 0
      %v500 = vsel %vm496, 1, 0
      %v501 = vadd.s32 %v497, %v498
      %v502 = vadd.s32 %v499, %v500
      %v503 = vadd.s32 %v501, %v502
      %v504 = vand.u32 %v503, 65535
      %v505 = vshrl.u32 %v503, 16
      %v506 = vcvt.s32.f32 %v504
      %v507 = vcvt.s32.f32 %v505
      %508 = vadd.xlane.f32.xlu0 %v506
      %v509 = vpop.xlane.xlu0 %508
      %510 = vadd.xlane.f32.xlu0 %v507
      %v511 = vpop.xlane.xlu0 %510
      %v512 = vcvt.f32.s32 %v509
      %v513 = vcvt.f32.s32 %v511
      %v514 = vshll.u32 %v513, 16
      %v515 = vadd.s32 %v514, %v512
      %v516 = vrot.slane %v515, 4
      %v517 = vadd.s32 %v515, %v516
      %v518 = vrot.slane %v517, 2
      %v519 = vadd.s32 %v517, %v518
      %v520 = vrot.slane %v519, 1
      %v521 = vadd.s32 %v519, %v520
      %s522 = vtos %v521
      %s523 = sld [smem:[#allocation6]]
      %s524 = sld [smem:[#allocation6 + $0x1]]
      %p525 = scmp.gt.f32.partialorder %s436, %s523
      %p526 = scmp.eq.f32.partialorder %s436, %s523
      %s527 = sld [smem:[#allocation7]]
      %s528 = sadd.s32 %s527, %s487
      %s529 = scalar_select %p526, %s528, %s527
      %s530 = scalar_select %p525, %s487, %s529
      %s531 = scalar_lea.smem [#allocation7], 0
      %532 = sst [smem:[%s531]] %s530
      %p533 = scmp.lt.f32.partialorder %s452, %s524
      %p534 = scmp.eq.f32.partialorder %s452, %s524
      %s535 = sld [smem:[#allocation7 + $0x1]]
      %s536 = sadd.s32 %s535, %s522
      %s537 = scalar_select %p534, %s536, %s535
      %s538 = scalar_select %p533, %s522, %s537
      %s539 = scalar_lea.smem [#allocation7], 1
      %540 = sst [smem:[%s539]] %s538
      %s541 = smax.f32 %s523, %s436
      %s542 = scalar_lea.smem [#allocation6], 0
      %543 = sst [smem:[%s542]] %s541
      %s544 = smin.f32 %s524, %s452
      %s545 = scalar_lea.smem [#allocation6], 1
      %546 = sst [smem:[%s545]] %s544
      %v547 = vld [vmem:[#allocation2] sm:$0xff]
      %548 = vadd.xlane.f32.xlu0 %v547
      %v549 = vpop.xlane.xlu0 %548
      %v550 = vrot.slane %v549, 4
      %v551 = vadd.f32 %v549, %v550
      %v552 = vrot.slane %v551, 2
      %v553 = vadd.f32 %v551, %v552
      %v554 = vrot.slane %v553, 1
      %v555 = vadd.f32 %v553, %v554
      %s556 = vtos %v555
      %s557 = scalar_lea.smem [#allocation8], 0
      %558 = sst [smem:[%s557]] %s556
      %v559 = vld [vmem:[#allocation3] sm:$0xff]
      %560 = vadd.xlane.f32.xlu0 %v559
      %v561 = vpop.xlane.xlu0 %560
      %v562 = vrot.slane %v561, 4
      %v563 = vadd.f32 %v561, %v562
      %v564 = vrot.slane %v563, 2
      %v565 = vadd.f32 %v563, %v564
      %v566 = vrot.slane %v565, 1
      %v567 = vadd.f32 %v565, %v566
      %s568 = vtos %v567
      %s569 = scalar_lea.smem [#allocation8], 1
      %570 = sst [smem:[%s569]] %s568
      %v571 = vld [vmem:[#allocation4] sm:$0xff]
      %572 = vadd.xlane.f32.xlu0 %v571
      %v573 = vpop.xlane.xlu0 %572
      %v574 = vrot.slane %v573, 4
      %v575 = vadd.f32 %v573, %v574
      %v576 = vrot.slane %v575, 2
      %v577 = vadd.f32 %v575, %v576
      %v578 = vrot.slane %v577, 1
      %v579 = vadd.f32 %v577, %v578
      %s580 = vtos %v579
      %s581 = scalar_lea.smem [#allocation8], 2
      %582 = sst [smem:[%s581]] %s580
      %v583 = vld [vmem:[#allocation5] sm:$0xff]
      %584 = vadd.xlane.f32.xlu0 %v583
      %v585 = vpop.xlane.xlu0 %584
      %v586 = vrot.slane %v585, 4
      %v587 = vadd.f32 %v585, %v586
      %v588 = vrot.slane %v587, 2
      %v589 = vadd.f32 %v587, %v588
      %v590 = vrot.slane %v589, 1
      %v591 = vadd.f32 %v589, %v590
      %s592 = vtos %v591
      %s593 = scalar_lea.smem [#allocation8], 3
      %594 = sst [smem:[%s593]] %s592
      %s595 = sld [smem:[#allocation7]]
      %s596 = scalar_lea.smem [#allocation10], 0
      %597 = sst [smem:[%s596]] %s595
      %s598 = sld [smem:[#allocation7 + $0x1]]
      %s599 = scalar_lea.smem [#allocation10], 1
      %600 = sst [smem:[%s599]] %s598
    $region21: #{combined_loss_average.1} parent=1 // pred_fallthru
      _
    // Predicated region
    $region22: #{combined_loss_average.1} parent=1 // pred_check
      _
    $region23: #{combined_loss_average.1} parent=1 // pred_check_branch
      %602 = sbr.rel (0) target = $region25
    $region24: #{combined_loss_average.1} parent=1 // pred_region
      %s604 = ssub.s32 16, 16
      %605 = vsyncadd [#allocation9], %s604
      %s607 = sshll.u32 %s2, 4
      %s608 = int_to_ptr.vmem [resolvable:$true] %s607
      %610 = dma.smem_to_vmem [#allocation8], 16, %s608, [#allocation9]
    $region25: #{combined_loss_average.1} parent=1 // pred_fallthru
      _
    // Predicated region
    $region26: #{combined_loss_average.1} parent=1 // pred_check
      _
    $region27: #{combined_loss_average.1} parent=1 // pred_check_branch
      %612 = sbr.rel (0) target = $region29
    $region28: #{combined_loss_average.1} parent=1 // pred_region
      %s614 = ssub.s32 16, 16
      %615 = vsyncadd [#allocation11], %s614
      %s617 = sshll.u32 %s3, 4
      %s618 = int_to_ptr.vmem [resolvable:$true] %s617
      %620 = dma.smem_to_vmem [#allocation10], 16, %s618, [#allocation11]
    $region29: #{combined_loss_average.1} parent=1 // pred_fallthru
      _
    // Predicated region
    $region30: #{combined_loss_average.1} parent=1 // pred_check
      _
    $region31: #{combined_loss_average.1} parent=1 // pred_check_branch
      %622 = sbr.rel (0) target = $region33
    $region32: #{combined_loss_average.1} parent=1 // pred_region
      %623 = dma.done [#allocation9], 16
    $region33: #{combined_loss_average.1} parent=1 // pred_fallthru
      _
    // Predicated region
    $region34: #{combined_loss_average.1} parent=1 // pred_check
      _
    $region35: #{combined_loss_average.1} parent=1 // pred_check_branch
      %625 = sbr.rel (0) target = $region37
    $region36: #{combined_loss_average.1} parent=1 // pred_region
      %626 = dma.done [#allocation11], 16
    $region37: #{combined_loss_average.1} parent=1 // pred_fallthru
      _
    %627 = sfence
    %628 = vsyncpa [#allocation9], 1
    %629 = vsyncpa [#allocation11], 1

</llo_original>
